<compile_context>
chip_gen: v7x
topology: tpu7x:2x2x1
jax: 0.10.0
libtpu: 0.0.40
codegen_flags: <defaults>
</compile_context>

<pallas_src>
import functools

import jax
import jax.numpy as jnp
from jax.experimental import pallas as pl
from jax.experimental.pallas import tpu as pltpu

_LANE = 128


def _round_up(x, m):
    return (x + m - 1) // m * m


# ----------------------------- Pallas kernel --------------------------------
def _gcn_layer_kernel(h_ref, w_ref, b_ref, a_ref, o_ref, acc_ref, *,
                      project_first, apply_relu):
    """One GCN layer in transposed layout, tiled over A.

    Grid = (dst tiles j [parallel], src tiles k [arbitrary / reduction]).
      h_ref : [F_in, TK]   source-node features (transposed), f32
      w_ref : [F_out, F_in] transposed weight, f32
      b_ref : [F_out, 1]    bias column, f32
      a_ref : [TK, TJ]      A^T tile (src, dst), bf16
      o_ref : [F_out, TJ]   output tile (transposed), f32
      acc_ref: f32 VMEM accumulator over the src (k) axis
    """
    k = pl.program_id(1)

    @pl.when(k == 0)
    def _init():
        acc_ref[...] = jnp.zeros_like(acc_ref)

    h = h_ref[...].astype(jnp.bfloat16)        # [F_in, TK]
    a = a_ref[...]                             # [TK, TJ] bf16

    if project_first:
        # (W^T @ H^T) @ A^T : N^2-scale matmul width = F_out
        p = jnp.dot(w_ref[...].astype(jnp.bfloat16), h,
                    preferred_element_type=jnp.float32)            # [F_out, TK]
        acc_ref[...] += jnp.dot(p.astype(jnp.bfloat16), a,
                                preferred_element_type=jnp.float32)  # [F_out, TJ]
    else:
        # W^T @ (H^T @ A^T) : N^2-scale matmul width = F_in
        acc_ref[...] += jnp.dot(h, a,
                                preferred_element_type=jnp.float32)  # [F_in, TJ]

    @pl.when(k == pl.num_programs(1) - 1)
    def _finalize():
        r = acc_ref[...]
        if not project_first:
            r = jnp.dot(w_ref[...].astype(jnp.bfloat16),
                        r.astype(jnp.bfloat16),
                        preferred_element_type=jnp.float32)          # [F_out, TJ]
        r = r + b_ref[...]
        if apply_relu:
            r = jnp.maximum(r, 0.0)
        o_ref[...] = r.astype(o_ref.dtype)


def _gcn_layer_pallas(h_t, a_t, w_t, b_col, *, apply_relu, tile_j, tile_k):
    """out^T = act(W^T @ h^T @ A^T + b^T), shape [F_out, N_pad] (f32)."""
    f_in, n_pad = h_t.shape
    f_out = w_t.shape[0]
    assert n_pad % tile_j == 0 and n_pad % tile_k == 0

    project_first = f_out < f_in           # keep the N^2 matmul as narrow as possible
    acc_rows = f_out if project_first else f_in

    kernel = functools.partial(_gcn_layer_kernel,
                               project_first=project_first,
                               apply_relu=apply_relu)

    return pl.pallas_call(
        kernel,
        out_shape=jax.ShapeDtypeStruct((f_out, n_pad), jnp.float32),
        grid_spec=pltpu.PrefetchScalarGridSpec(
            num_scalar_prefetch=0,
            grid=(n_pad // tile_j, n_pad // tile_k),
            in_specs=[
                pl.BlockSpec((f_in, tile_k), lambda j, k: (0, k)),    # h^T src cols
                pl.BlockSpec((f_out, f_in), lambda j, k: (0, 0)),     # W^T (full)
                pl.BlockSpec((f_out, 1), lambda j, k: (0, 0)),        # bias column
                pl.BlockSpec((tile_k, tile_j), lambda j, k: (k, j)),  # A^T tile
            ],
            out_specs=pl.BlockSpec((f_out, tile_j), lambda j, k: (0, j)),
            scratch_shapes=[pltpu.VMEM((acc_rows, tile_j), jnp.float32)],
        ),
        compiler_params=pltpu.CompilerParams(
            dimension_semantics=("parallel", "arbitrary")),
    )(h_t, w_t, b_col, a_t)


def gnn_forward_pallas(a_norm, x, params, *, tile=1024):
    """3-layer GCN forward pass. Returns [N, 1] (node-major), like the PyTorch module."""
    n, _ = x.shape

    # Tile sizes: multiples of 128, clamped to the (padded) graph size.
    n_pad128 = _round_up(n, _LANE)
    tile = max(_LANE, min(_round_up(tile, _LANE), n_pad128))
    n_pad = _round_up(n, tile)

    # Transposed, zero-padded adjacency A^T[src, dst]; bf16 for MXU / DMA / VMEM.
    a_t = jnp.zeros((n_pad, n_pad), jnp.float32).at[:n, :n].set(a_norm.T)
    a_t = a_t.astype(jnp.bfloat16)

    # Transposed, zero-padded node features [F0, N_pad] (f32; cast to bf16 in-kernel).
    h_t = jnp.zeros((x.shape[1], n_pad), jnp.float32).at[:, :n].set(x.T)

    n_layers = len(params)
    for i, (w, b) in enumerate(params):
        h_t = _gcn_layer_pallas(
            h_t, a_t, w.T, b.reshape(-1, 1),
            apply_relu=(i < n_layers - 1),
            tile_j=tile, tile_k=tile)

    # Final layer output is lane-dense [1, N_pad]; slice padding, return node-major.
    return h_t[:, :n].T                                   # [N, 1]


# ------------------------------ JAX glue -------------------------------------
def gcn_normalized_adjacency(edge_index, num_nodes):
    """Dense symmetric-normalized adjacency with self loops (PyG gcn_norm)."""
    row = edge_index[0]  # source
    col = edge_index[1]  # target
    loop = jnp.arange(num_nodes, dtype=row.dtype)
    row = jnp.concatenate([row, loop])
    col = jnp.concatenate([col, loop])
    w = jnp.ones(row.shape[0], dtype=jnp.float32)

    deg = jnp.zeros((num_nodes,), jnp.float32).at[col].add(w)
    deg_inv_sqrt = jnp.where(deg > 0, jax.lax.rsqrt(deg), 0.0)
    norm = deg_inv_sqrt[row] * w * deg_inv_sqrt[col]

    # Aggregation at target: out[dst] = sum_e norm_e * x[src_e]  ->  A[dst, src]
    a = jnp.zeros((num_nodes, num_nodes), jnp.float32).at[col, row].add(norm)
    return a


def init_params(key, input_dim):
    """Deterministic glorot-uniform weights / zero biases for 3 GCNConv layers."""
    dims = [(input_dim, 32), (32, 16), (16, 1)]
    params = []
    for i, (fi, fo) in enumerate(dims):
        k = jax.random.fold_in(key, i)
        limit = (6.0 / (fi + fo)) ** 0.5
        w = jax.random.uniform(k, (fi, fo), jnp.float32, -limit, limit)
        b = jnp.zeros((1, fo), jnp.float32)
        params.append((w, b))
    return params


def gnn_forward_ref(a_norm, x, params):
    """Pure-JAX (f32, node-major) reference of the same math for a correctness check."""
    h = x
    for i, (w, b) in enumerate(params):
        h = a_norm @ (h @ w) + b
        if i < len(params) - 1:
            h = jnp.maximum(h, 0.0)
    return h


# --------------------------------- main --------------------------------------
if __name__ == "__main__":
    key = jax.random.PRNGKey(0)
    num_nodes = 16
    input_dim = 8
    num_edges = 32

    k_x, k_src, k_dst, k_w = jax.random.split(key, 4)
    x = jax.random.normal(k_x, (num_nodes, input_dim), jnp.float32)
    src = jax.random.randint(k_src, (num_edges,), 0, num_nodes, jnp.int32)
    dst = jax.random.randint(k_dst, (num_edges,), 0, num_nodes, jnp.int32)
    edge_index = jnp.stack([src, dst], axis=0)  # [2, E]

    params = init_params(k_w, input_dim)
    a_norm = gcn_normalized_adjacency(edge_index, num_nodes)

    out = gnn_forward_pallas(a_norm, x, params)
    out = jax.block_until_ready(out)

    # Reference uses the same bf16-rounded adjacency the kernel consumes; remaining
    # differences come from in-kernel bf16 matmul operands (f32 accumulation).
    a_bf16 = a_norm.astype(jnp.bfloat16).astype(jnp.float32)
    ref = gnn_forward_ref(a_bf16, x, params)

    assert out.shape == (num_nodes, 1)
    assert jnp.allclose(out, ref, atol=5e-2, rtol=5e-2), (
        f"max abs err {jnp.max(jnp.abs(out - ref))}")

    # TODO(synk): if the real workload is many small graphs, batch them into one
    # pallas_call (leading grid axis over graphs) to amortize dispatch/DMA overhead.
    print("KERNEL_OK")
</pallas_src>

<mosaic_0001>
module attributes {stable_mosaic.version = 11 : i64} {
  func.func @_gcn_layer_kernel(%arg0: i32, %arg1: i32, %arg2: memref<8x128xf32, #tpu.memory_space<vmem>>, %arg3: memref<32x8xf32, #tpu.memory_space<vmem>>, %arg4: memref<32x1xf32, #tpu.memory_space<vmem>>, %arg5: memref<128x128xbf16, #tpu.memory_space<vmem>>, %arg6: memref<32x128xf32, #tpu.memory_space<vmem>>, %arg7: memref<8x128xf32, #tpu.memory_space<vmem>>) attributes {dimension_semantics = [#tpu.dimension_semantics<parallel>, #tpu.dimension_semantics<arbitrary>], iteration_bounds = array<i64: 1, 1>, scalar_prefetch = 0 : i64, scratch_operands = 1 : i64, tpu.core_type = #tpu.core_type<tc>, window_params = [{transform_indices = @transform_0, window_bounds = array<i64: 8, 128>}, {pipeline_mode = #tpu.pipeline_mode<synchronous>, transform_indices = @transform_1, window_bounds = array<i64: 32, 8>}, {pipeline_mode = #tpu.pipeline_mode<synchronous>, transform_indices = @transform_2, window_bounds = array<i64: 32, 1>}, {transform_indices = @transform_3, window_bounds = array<i64: 128, 128>}, {transform_indices = @transform_4, window_bounds = array<i64: 32, 128>}]} {
    %c0_i32 = arith.constant 0 : i32
    %0 = arith.cmpi eq, %arg1, %c0_i32 : i32
    %1 = arith.extui %0 : i1 to i32
    %c0_i32_0 = arith.constant 0 : i32
    %2 = arith.cmpi ne, %1, %c0_i32_0 : i32
    scf.if %2 {
      %cst_10 = arith.constant 0.000000e+00 : f32
      %13 = vector.broadcast %cst_10 : f32 to vector<8x128xf32>
      %c0_11 = arith.constant 0 : index
      %c0_12 = arith.constant 0 : index
      %14 = vector.load %arg7[%c0_11, %c0_12] : memref<8x128xf32, #tpu.memory_space<vmem>>, vector<8x128xf32>
      tpu.vector_store %arg7[%c0_11, %c0_12], %13 {strides = array<i32>} : memref<8x128xf32, #tpu.memory_space<vmem>>, vector<8x128xf32>,
    } else {
    }
    %c0 = arith.constant 0 : index
    %c0_1 = arith.constant 0 : index
    %3 = vector.load %arg2[%c0, %c0_1] : memref<8x128xf32, #tpu.memory_space<vmem>>, vector<8x128xf32>
    %4 = arith.truncf %3 : vector<8x128xf32> to vector<8x128xbf16>
    %c0_2 = arith.constant 0 : index
    %c0_3 = arith.constant 0 : index
    %5 = vector.load %arg5[%c0_2, %c0_3] : memref<128x128xbf16, #tpu.memory_space<vmem>>, vector<128x128xbf16>
    %c0_4 = arith.constant 0 : index
    %c0_5 = arith.constant 0 : index
    %6 = vector.load %arg7[%c0_4, %c0_5] : memref<8x128xf32, #tpu.memory_space<vmem>>, vector<8x128xf32>
    %cst = arith.constant dense<0.000000e+00> : vector<8x128xf32>
    %7 = tpu.matmul %4, %5, %cst {dimension_numbers = #tpu.dot_dimension_numbers<[1], [0], [0], [1], [0, 0, 1, 1], [], []>} : vector<8x128xbf16>, vector<128x128xbf16>, vector<8x128xf32> -> vector<8x128xf32>
    %8 = arith.addf %6, %7 : vector<8x128xf32>
    %c0_6 = arith.constant 0 : index
    %c0_7 = arith.constant 0 : index
    %9 = vector.load %arg7[%c0_6, %c0_7] : memref<8x128xf32, #tpu.memory_space<vmem>>, vector<8x128xf32>
    tpu.vector_store %arg7[%c0_6, %c0_7], %8 {strides = array<i32>} : memref<8x128xf32, #tpu.memory_space<vmem>>, vector<8x128xf32>,
    %c0_i32_8 = arith.constant 0 : i32
    %10 = arith.cmpi eq, %arg1, %c0_i32_8 : i32
    %11 = arith.extui %10 : i1 to i32
    %c0_i32_9 = arith.constant 0 : i32
    %12 = arith.cmpi ne, %11, %c0_i32_9 : i32
    scf.if %12 {
      %c0_10 = arith.constant 0 : index
      %c0_11 = arith.constant 0 : index
      %13 = vector.load %arg7[%c0_10, %c0_11] : memref<8x128xf32, #tpu.memory_space<vmem>>, vector<8x128xf32>
      %c0_12 = arith.constant 0 : index
      %c0_13 = arith.constant 0 : index
      %14 = vector.load %arg3[%c0_12, %c0_13] : memref<32x8xf32, #tpu.memory_space<vmem>>, vector<32x8xf32>
      %15 = arith.truncf %14 : vector<32x8xf32> to vector<32x8xbf16>
      %16 = arith.truncf %13 : vector<8x128xf32> to vector<8x128xbf16>
      %cst_14 = arith.constant dense<0.000000e+00> : vector<32x128xf32>
      %17 = tpu.matmul %15, %16, %cst_14 {dimension_numbers = #tpu.dot_dimension_numbers<[1], [0], [0], [1], [0, 0, 1, 1], [], []>} : vector<32x8xbf16>, vector<8x128xbf16>, vector<32x128xf32> -> vector<32x128xf32>
      %c0_15 = arith.constant 0 : index
      %c0_16 = arith.constant 0 : index
      %18 = vector.load %arg4[%c0_15, %c0_16] : memref<32x1xf32, #tpu.memory_space<vmem>>, vector<32x1xf32>
      %19 = vector.broadcast %18 : vector<32x1xf32> to vector<32x128xf32>
      %20 = arith.addf %17, %19 : vector<32x128xf32>
      %cst_17 = arith.constant 0.000000e+00 : f32
      %21 = vector.broadcast %cst_17 : f32 to vector<32x128xf32>
      %22 = arith.maximumf %20, %21 : vector<32x128xf32>
      %c0_18 = arith.constant 0 : index
      %c0_19 = arith.constant 0 : index
      %23 = vector.load %arg6[%c0_18, %c0_19] : memref<32x128xf32, #tpu.memory_space<vmem>>, vector<32x128xf32>
      tpu.vector_store %arg6[%c0_18, %c0_19], %22 {strides = array<i32>} : memref<32x128xf32, #tpu.memory_space<vmem>>, vector<32x128xf32>,
    } else {
    }
    return
  }
  func.func @transform_0(%arg0: i32, %arg1: i32) -> (i32, i32) {
    %c0_i32 = arith.constant 0 : i32
    %c0_i32_0 = arith.constant 0 : i32
    return %c0_i32, %arg1 : i32, i32
  }
  func.func @transform_1(%arg0: i32, %arg1: i32) -> (i32, i32) {
    %c0_i32 = arith.constant 0 : i32
    %c0_i32_0 = arith.constant 0 : i32
    %c0_i32_1 = arith.constant 0 : i32
    return %c0_i32, %c0_i32_0 : i32, i32
  }
  func.func @transform_2(%arg0: i32, %arg1: i32) -> (i32, i32) {
    %c0_i32 = arith.constant 0 : i32
    %c0_i32_0 = arith.constant 0 : i32
    %c0_i32_1 = arith.constant 0 : i32
    return %c0_i32, %c0_i32_0 : i32, i32
  }
  func.func @transform_3(%arg0: i32, %arg1: i32) -> (i32, i32) {
    %c0_i32 = arith.constant 0 : i32
    return %arg1, %arg0 : i32, i32
  }
  func.func @transform_4(%arg0: i32, %arg1: i32) -> (i32, i32) {
    %c0_i32 = arith.constant 0 : i32
    %c0_i32_0 = arith.constant 0 : i32
    return %c0_i32, %arg0 : i32, i32
  }
}

</mosaic_0001>

<llo_original>
// kernel: tpu_custom_call.1
$region0: #{tpu_custom_call.1}
  #allocation0 [shape = 'u32[]', space=smem, size = 0x4, offset = 0x4, fixed_abs, tag = 'smem constant byte address 0x4 - core index']
  #allocation1 [shape = 'u32[144,128]{1,0:T(1,128)}', space=vmem, size = 0x12000, scoped, tag = 'internal scratch']
  #allocation2 [shape = 'f32[8,128]{1,0:T(8,128)}', space=vmem, size = 0x1000, scoped, tag = 'scratch operand']
  %s0 = inlined_call_operand.vmem [shape: f32[8,128], index: 0, kind: input, shape index: {}]
  %s1 = inlined_call_operand.vmem [shape: f32[32,8], index: 1, kind: input, shape index: {}]
  %s2 = inlined_call_operand.vmem [shape: f32[32,1], index: 2, kind: input, shape index: {}]
  %s3 = inlined_call_operand.vmem [shape: bf16[128,128], index: 3, kind: input, shape index: {}]
  %s4 = inlined_call_operand.hbm [shape: f32[32,128], index: 4, kind: output, shape index: {}]
  %s5 = sld [smem:[#allocation0]]
  $region34: #{tpu_custom_call.1} parent=0
    _
  %s7 = ssub.s32 1, %s5
  %s8 = scalar_select 0, %s7, %s5
  $region1: #{tpu_custom_call.1} parent=0
    #allocation3 [shape = 'u8[16384]{0}', space=vmem, size = 0x4000, scoped, tag = 'output window, operand 0, single buffered']
    #allocation4 [shape = 's32[1]{0}', space=sflag, size = 0x4, scoped, tag = 'scoped memory for tpu_custom_call.1']
    %9 = vsyncpa [#allocation4], 0
    // Predicated region
    $region2: #{tpu_custom_call.1} parent=1 // pred_check
      _
    $region3: #{tpu_custom_call.1} parent=1 // pred_check_branch
      %11 = sbr.rel (0) target = $region5
    $region4: #{tpu_custom_call.1} parent=1 // pred_region
      _
    $region5: #{tpu_custom_call.1} parent=1 // pred_fallthru
      _
    // Predicated region
    $region6: #{tpu_custom_call.1} parent=1 // pred_check
      _
    $region7: #{tpu_custom_call.1} parent=1 // pred_check_branch
      %13 = sbr.rel (0) target = $region9
    $region8: #{tpu_custom_call.1} parent=1 // pred_region
      _
    $region9: #{tpu_custom_call.1} parent=1 // pred_fallthru
      _
    // Predicated region
    $region10: #{tpu_custom_call.1} parent=1 // pred_check
      _
    $region11: #{tpu_custom_call.1} parent=1 // pred_check_branch
      %15 = sbr.rel (0) target = $region13
    $region12: #{tpu_custom_call.1} parent=1 // pred_region
      _
    $region13: #{tpu_custom_call.1} parent=1 // pred_fallthru
      _
    // Predicated region
    $region14: #{tpu_custom_call.1} parent=1 // pred_check
      _
    $region15: #{tpu_custom_call.1} parent=1 // pred_check_branch
      %17 = sbr.rel (0) target = $region17
    $region16: #{tpu_custom_call.1} parent=1 // pred_region
      _
    $region17: #{tpu_custom_call.1} parent=1 // pred_fallthru
      _
    %p19 = scmp.eq.s32.totalorder 0, 0
    // Predicated region
    $region18: #{tpu_custom_call.1} parent=1 // pred_check
      %p20 = pneg %p19
    $region19: #{tpu_custom_call.1} parent=1 // pred_check_branch
      %22 = sbr.rel (%p20) target = $region21
    $region20: #{tpu_custom_call.1} parent=1 // pred_region
      %23 = vst [vmem:[#allocation2] sm:$0xff] 0.0
    $region21: #{tpu_custom_call.1} parent=1 // pred_fallthru
      _
    %v24 = vld [vmem:[%s0] sm:$0xff]
    %v25 = vpack.c.bf16 %v24, %v24
    %v26 = vld [vmem:[%s3] sm:$0xf]
    %v27 = vld [vmem:[%s3 + $0x4] sm:$0xf]
    %v28 = vld [vmem:[%s3 + $0x8] sm:$0xf]
    %v29 = vld [vmem:[%s3 + $0xc] sm:$0xf]
    %v30 = vld [vmem:[%s3 + $0x10] sm:$0xf]
    %v31 = vld [vmem:[%s3 + $0x14] sm:$0xf]
    %v32 = vld [vmem:[%s3 + $0x18] sm:$0xf]
    %v33 = vld [vmem:[%s3 + $0x1c] sm:$0xf]
    %v34 = vld [vmem:[%s3 + $0x20] sm:$0xf]
    %v35 = vld [vmem:[%s3 + $0x24] sm:$0xf]
    %v36 = vld [vmem:[%s3 + $0x28] sm:$0xf]
    %v37 = vld [vmem:[%s3 + $0x2c] sm:$0xf]
    %v38 = vld [vmem:[%s3 + $0x30] sm:$0xf]
    %v39 = vld [vmem:[%s3 + $0x34] sm:$0xf]
    %v40 = vld [vmem:[%s3 + $0x38] sm:$0xf]
    %v41 = vld [vmem:[%s3 + $0x3c] sm:$0xf]
    %v42 = vld [vmem:[#allocation2] sm:$0xff]
    %v59 = vunpack.c.l.b16 %v26
    %v60 = vunpack.c.l.b16 %v27
    %v61 = vunpack.c.l.b16 %v28
    %v62 = vunpack.c.l.b16 %v29
    %v63 = vunpack.c.l.b16 %v30
    %v64 = vunpack.c.l.b16 %v31
    %v65 = vunpack.c.l.b16 %v32
    %v66 = vunpack.c.l.b16 %v33
    %v67 = vunpack.c.l.b16 %v34
    %v68 = vunpack.c.l.b16 %v35
    %v69 = vunpack.c.l.b16 %v36
    %v70 = vunpack.c.l.b16 %v37
    %v71 = vunpack.c.l.b16 %v38
    %v72 = vunpack.c.l.b16 %v39
    %v73 = vunpack.c.l.b16 %v40
    %v74 = vunpack.c.l.b16 %v41
    %v75 = vpack.c.b16 %v60, %v59
    %v76 = vpack.c.b16 %v62, %v61
    %v77 = vpack.c.b16 %v64, %v63
    %v78 = vpack.c.b16 %v66, %v65
    %v79 = vpack.c.b16 %v68, %v67
    %v80 = vpack.c.b16 %v70, %v69
    %v81 = vpack.c.b16 %v72, %v71
    %v82 = vpack.c.b16 %v74, %v73
    %91 = vmatprep.subr.bf16.mxu0 0
    %92 = vmatpush1.bf16.msra.mxu0 %v75
    %93 = vmatprep.subr.bf16.mxu0 0
    %94 = vmatpush1.bf16.msra.mxu0 %v76
    %95 = vmatprep.subr.bf16.mxu0 0
    %96 = vmatpush1.bf16.msra.mxu0 %v77
    %97 = vmatprep.subr.bf16.mxu0 0
    %98 = vmatpush1.bf16.msra.mxu0 %v78
    %99 = vmatprep.subr.bf16.mxu0 0
    %100 = vmatpush1.bf16.msra.mxu0 %v79
    %101 = vmatprep.subr.bf16.mxu0 0
    %102 = vmatpush1.bf16.msra.mxu0 %v80
    %103 = vmatprep.subr.bf16.mxu0 0
    %104 = vmatpush1.bf16.msra.mxu0 %v81
    %105 = vmatprep.subr.bf16.mxu0 0
    %106 = vmatpush1.bf16.msra.mxu0 %v82
    %107 = vmatprep.subr.bf16.mxu0 0
    %108 = vmatpush1.bf16.msra.mxu0 0
    %109 = vmatprep.subr.bf16.mxu0 0
    %110 = vmatpush1.bf16.msra.mxu0 0
    %111 = vmatprep.subr.bf16.mxu0 0
    %112 = vmatpush1.bf16.msra.mxu0 0
    %113 = vmatprep.subr.bf16.mxu0 0
    %114 = vmatpush1.bf16.msra.mxu0 0
    %115 = vmatprep.subr.bf16.mxu0 0
    %116 = vmatpush1.bf16.msra.mxu0 0
    %117 = vmatprep.subr.bf16.mxu0 0
    %118 = vmatpush1.bf16.msra.mxu0 0
    %119 = vmatprep.subr.bf16.mxu0 0
    %120 = vmatpush1.bf16.msra.mxu0 0
    %121 = vmatprep.subr.bf16.mxu0 0
    %122 = vmatpush1.bf16.msra.mxu0 0
    %123 = vmatprep.mubr.bf16.mxu0 0
    %124 = vmatmul.mubr.bf16.gmra.mrb[0].mxu0 %v25
    %v125 = vpop.f32.mrb[0].mxu0
    %v126 = vadd.f32 0.0, %v125
    %v127 = vpop.f32.mrb[0].mxu0
    %v128 = vpop.f32.mrb[0].mxu0
    %v129 = vpop.f32.mrb[0].mxu0
    %130 = vdwg.mxu0
    %v131 = vadd.f32 %v42, %v126
    %132 = vst [vmem:[#allocation2] sm:$0xff] %v131
    // Predicated region
    $region22: #{tpu_custom_call.1} parent=1 // pred_check
      %p133 = pneg %p19
    $region23: #{tpu_custom_call.1} parent=1 // pred_check_branch
      %135 = sbr.rel (%p133) target = $region25
    $region24: #{tpu_custom_call.1} parent=1 // pred_region
      %v136 = vld [vmem:[#allocation2] sm:$0xff]
      %v137 = vld [vmem:[%s1] sm:$0xff]
      %v138 = vld [vmem:[%s1 + $0x8] sm:$0xff]
      %v139 = vld [vmem:[%s1 + $0x10] sm:$0xff]
      %v140 = vld [vmem:[%s1 + $0x18] sm:$0xff]
      %v141 = vpack.c.bf16 %v138, %v137
      %v142 = vpack.c.bf16 %v140, %v139
      %v143 = vpack.c.bf16 %v136, %v136
      %v144 = vld [vmem:[%s2] sm:$0xff]
      %v145 = vld [vmem:[%s2 + $0x8] sm:$0xff]
      %v146 = vld [vmem:[%s2 + $0x10] sm:$0xff]
      %v147 = vld [vmem:[%s2 + $0x18] sm:$0xff]
      %149 = vset.pattern.permute.xlu0 0
      %150 = vperm.xlu0 %149, %v144
      %v151 = vpop.permute.xlu0 %150
      %154 = vset.pattern.permute.xlu0 0
      %155 = vperm.xlu0 %154, %v145
      %v156 = vpop.permute.xlu0 %155
      %159 = vset.pattern.permute.xlu0 0
      %160 = vperm.xlu0 %159, %v146
      %v161 = vpop.permute.xlu0 %160
      %164 = vset.pattern.permute.xlu0 0
      %165 = vperm.xlu0 %164, %v147
      %v166 = vpop.permute.xlu0 %165
      %vm168 = vcmask 64512
      %v170 = vsel %vm168, %v141, 0
      %v173 = vsel %vm168, %v142, 0
      %vm175 = vcmask 1043456
      %v177 = vsel %vm175, %v143, 0
      %179 = vmatprep.subr.bf16.mxu0 0
      %180 = vmatpush1.bf16.msra.mxu0 %v177
      %181 = vmatprep.subr.bf16.mxu0 0
      %182 = vmatpush1.bf16.msra.mxu0 0
      %183 = vmatprep.subr.bf16.mxu0 0
      %184 = vmatpush1.bf16.msra.mxu0 0
      %185 = vmatprep.subr.bf16.mxu0 0
      %186 = vmatpush1.bf16.msra.mxu0 0
      %187 = vmatprep.subr.bf16.mxu0 0
      %188 = vmatpush1.bf16.msra.mxu0 0
      %189 = vmatprep.subr.bf16.mxu0 0
      %190 = vmatpush1.bf16.msra.mxu0 0
      %191 = vmatprep.subr.bf16.mxu0 0
      %192 = vmatpush1.bf16.msra.mxu0 0
      %193 = vmatprep.subr.bf16.mxu0 0
      %194 = vmatpush1.bf16.msra.mxu0 0
      %195 = vmatprep.subr.bf16.mxu0 0
      %196 = vmatpush1.bf16.msra.mxu0 0
      %197 = vmatprep.subr.bf16.mxu0 0
      %198 = vmatpush1.bf16.msra.mxu0 0
      %199 = vmatprep.subr.bf16.mxu0 0
      %200 = vmatpush1.bf16.msra.mxu0 0
      %201 = vmatprep.subr.bf16.mxu0 0
      %202 = vmatpush1.bf16.msra.mxu0 0
      %203 = vmatprep.subr.bf16.mxu0 0
      %204 = vmatpush1.bf16.msra.mxu0 0
      %205 = vmatprep.subr.bf16.mxu0 0
      %206 = vmatpush1.bf16.msra.mxu0 0
      %207 = vmatprep.subr.bf16.mxu0 0
      %208 = vmatpush1.bf16.msra.mxu0 0
      %209 = vmatprep.subr.bf16.mxu0 0
      %210 = vmatpush1.bf16.msra.mxu0 0
      %211 = vmatprep.mubr.bf16.mxu0 0
      %212 = vmatmul.mubr.bf16.gmra.mrb[0].mxu0 %v170
      %v213 = vpop.f32.mrb[0].mxu0
      %v214 = vadd.f32 %v151, %v213
      %v215 = vpop.f32.mrb[0].mxu0
      %v216 = vpop.f32.mrb[0].mxu0
      %v217 = vadd.f32 %v156, %v216
      %v218 = vpop.f32.mrb[0].mxu0
      %219 = vmatprep.mubr.bf16.mxu0 0
      %220 = vmatmul.mubr.bf16.gmra.mrb[0].mxu0 %v173
      %v221 = vpop.f32.mrb[0].mxu0
      %v222 = vadd.f32 %v161, %v221
      %v223 = vpop.f32.mrb[0].mxu0
      %v224 = vpop.f32.mrb[0].mxu0
      %v225 = vadd.f32 %v166, %v224
      %v226 = vpop.f32.mrb[0].mxu0
      %227 = vdwg.mxu0
      %v228 = vmax.f32 %v214, 0.0
      %v229 = vmax.f32 %v217, 0.0
      %v230 = vmax.f32 %v222, 0.0
      %v231 = vmax.f32 %v225, 0.0
      %232 = vst [vmem:[#allocation3] sm:$0xff] %v228
      %233 = vst [vmem:[#allocation3 + $0x8] sm:$0xff] %v229
      %234 = vst [vmem:[#allocation3 + $0x10] sm:$0xff] %v230
      %235 = vst [vmem:[#allocation3 + $0x18] sm:$0xff] %v231
    $region25: #{tpu_custom_call.1} parent=1 // pred_fallthru
      _
    // Predicated region
    $region26: #{tpu_custom_call.1} parent=1 // pred_check
      _
    $region27: #{tpu_custom_call.1} parent=1 // pred_check_branch
      %237 = sbr.rel (0) target = $region29
    $region28: #{tpu_custom_call.1} parent=1 // pred_region
      %s239 = ssub.s32 512, 512
      %240 = vsyncadd [#allocation4], %s239
      %s241 = sshll.u32 [#allocation3], 4
      %s242 = int_to_ptr.vmem [resolvable:$true] %s241
      %247 = dma.vmem_to_hbm [thread:$0]  %s242, 512, %s4, [#allocation4], 128, 128, 8
    $region29: #{tpu_custom_call.1} parent=1 // pred_fallthru
      _
    // Predicated region
    $region30: #{tpu_custom_call.1} parent=1 // pred_check
      _
    $region31: #{tpu_custom_call.1} parent=1 // pred_check_branch
      %249 = sbr.rel (0) target = $region33
    $region32: #{tpu_custom_call.1} parent=1 // pred_region
      %250 = dma.done [#allocation4], 512
    $region33: #{tpu_custom_call.1} parent=1 // pred_fallthru
      _
    %251 = vsyncpa [#allocation4], 1

</llo_original>
